<compile_context>
chip_gen: v5e
topology: v5e:2x2
jax: 0.10.0
libtpu: 0.0.40
codegen_flags: <defaults>
</compile_context>

<pallas_src>
import functools
import math

import jax
import jax.numpy as jnp
from jax.experimental import pallas as pl
from jax.experimental.pallas import tpu as pltpu


def _normalize_kernel(x_ref, o_ref, *, power):
    x = x_ref[...]
    xf = x.astype(jnp.float32)

    if power == 2:
        # Fast path: sum of squares + rsqrt on the EUP (free VLIW slot).
        ss = jnp.sum(xf * xf, axis=-1, keepdims=True)
        inv = jax.lax.rsqrt(ss)
    elif power == 1:
        # torch: x.pow(1).sum(-1) -> plain row sum (no abs).
        s = jnp.sum(xf, axis=-1, keepdims=True)
        inv = pl.reciprocal(s, approx=False)
    elif isinstance(power, int) and power > 0:
        # Integer p: repeated multiply on the VALU (avoids exp/log on the EUP).
        xp = xf
        for _ in range(power - 1):
            xp = xp * xf
        s = jnp.sum(xp, axis=-1, keepdims=True)
        if power == 4:
            inv = jax.lax.rsqrt(jnp.sqrt(s))          # s**(-1/4), EUP-only
        else:
            # Per-row scalar (tb, 1) -> negligible EUP cost.
            inv = jnp.power(s, -1.0 / float(power))
    else:
        # General/fractional p: matches torch x.pow(p) (NaN for negative x).
        s = jnp.sum(jnp.power(xf, float(power)), axis=-1, keepdims=True)
        inv = jnp.power(s, -1.0 / float(power))

    if x.dtype == jnp.bfloat16:
        # bf16 VALU on v6e/v7x: keep the big elementwise multiply in bf16.
        o_ref[...] = (x * inv.astype(jnp.bfloat16)).astype(o_ref.dtype)
    else:
        o_ref[...] = (xf * inv).astype(o_ref.dtype)


def _vmem_capacity_bytes():
    try:
        return int(pltpu.get_tpu_info().vmem_capacity_bytes)
    except Exception:
        return 64 * 1024 * 1024   # conservative (v7x-sized) fallback


def _pick_row_tile(rows, d, itemsize, vmem_capacity_bytes):
    """Row tile sized to the ~1-4 MiB roofline sweet spot, budgeted per TPU
    generation and accounting for the in-kernel f32 upcast."""
    # Keep sublane packing full: f32 -> 8, bf16 -> 16, int8/fp8 -> 32.
    mult = max(8, 32 // max(int(itemsize), 1))

    # Buffer budget for 2x(in) + 2x(out) double-buffered tiles plus f32 temps.
    if vmem_capacity_bytes >= 96 * 1024 * 1024:      # v5e / v6e (128 MiB VMEM)
        budget = 16 * 1024 * 1024
    else:                                            # v7x (64 MiB physical)
        budget = 10 * 1024 * 1024
    bytes_per_row = (4 * itemsize + 8) * d           # 2*in + 2*out + ~f32 temps
    cap = max(mult, (budget // bytes_per_row) // mult * mult)

    # If a single large block would result, split so the "parallel" axis has
    # >= 2 steps (keeps both v7x TensorCores busy).  Skip for tiny inputs.
    if rows * d * itemsize > (2 << 20) and rows >= 2 * mult:
        half_rows = (rows + 1) // 2
        half_rows = ((half_rows + mult - 1) // mult) * mult
        cap = min(cap, half_rows)

    rows_up = ((rows + mult - 1) // mult) * mult
    return min(cap, rows_up)


def normalize(x, power=2):
    """L_p-normalize x along its last dimension (torch `Normalize` forward)."""
    orig_shape = x.shape
    d = orig_shape[-1]
    rows = math.prod(orig_shape[:-1]) if len(orig_shape) > 1 else 1
    x2 = x.reshape(rows, d)
    itemsize = x2.dtype.itemsize

    vmem_cap = _vmem_capacity_bytes()
    tb = _pick_row_tile(rows, d, itemsize, vmem_cap)
    grid = (pl.cdiv(rows, tb),)                       # partial last block is masked

    # Explicit scoped-VMEM limit: generous on 128-MiB parts, safe on v7x.
    vmem_limit = 64 * 1024 * 1024 if vmem_cap >= 96 * 1024 * 1024 else 28 * 1024 * 1024

    cost = pl.CostEstimate(
        flops=3 * rows * d,                           # x*x, reduce-add, scale
        transcendentals=rows,                         # one rsqrt per row
        bytes_accessed=2 * rows * d * itemsize,       # read x, write out
    )

    out = pl.pallas_call(
        functools.partial(_normalize_kernel, power=power),
        out_shape=jax.ShapeDtypeStruct((rows, d), x.dtype),
        grid_spec=pltpu.PrefetchScalarGridSpec(
            num_scalar_prefetch=0,
            grid=grid,
            in_specs=[pl.BlockSpec((tb, d), lambda i: (i, 0))],
            out_specs=pl.BlockSpec((tb, d), lambda i: (i, 0)),
        ),
        compiler_params=pltpu.CompilerParams(
            dimension_semantics=("parallel",),        # rows are independent
            vmem_limit_bytes=vmem_limit,
        ),
        cost_estimate=cost,
    )(x2)
    return out.reshape(orig_shape)
    # TODO(synk): if D is ever not a multiple of 128, pad the feature dim
    # upstream to keep stores lane-dense rather than shrinking the last block.


def _reference(x, power=2):
    norm = jnp.power(jnp.sum(jnp.power(x, power), axis=-1, keepdims=True),
                     1.0 / power)
    return x / norm


if __name__ == "__main__":
    # Small shapes consistent with the module: normalize feature vectors along
    # the last dim.  Feature dim chosen lane-dense (128).
    B, S, D = 2, 8, 128

    key = jax.random.PRNGKey(0)
    x = jax.random.normal(key, (B, S, D), dtype=jnp.float32)

    out = normalize(x, power=2)
    out = jax.block_until_ready(out)

    ref = _reference(x, power=2)
    assert out.shape == x.shape
    assert jnp.allclose(out, ref, atol=1e-5, rtol=1e-5), "mismatch vs reference"

    print("KERNEL_OK")
</pallas_src>

<mosaic_0001>
module attributes {stable_mosaic.version = 11 : i64} {
  func.func @_normalize_kernel(%arg0: i32, %arg1: memref<16x128xf32, #tpu.memory_space<vmem>>, %arg2: memref<16x128xf32, #tpu.memory_space<vmem>>) attributes {dimension_semantics = [#tpu.dimension_semantics<parallel>], iteration_bounds = array<i64: 1>, scalar_prefetch = 0 : i64, scratch_operands = 0 : i64, tpu.core_type = #tpu.core_type<tc>, window_params = [{transform_indices = @transform_0, window_bounds = array<i64: 16, 128>}, {transform_indices = @transform_1, window_bounds = array<i64: 16, 128>}]} {
    %c0 = arith.constant 0 : index
    %c0_0 = arith.constant 0 : index
    %0 = vector.load %arg1[%c0, %c0_0] : memref<16x128xf32, #tpu.memory_space<vmem>>, vector<16x128xf32>
    %1 = arith.mulf %0, %0 : vector<16x128xf32>
    %cst = arith.constant dense<0.000000e+00> : vector<16xf32>
    %2 = vector.multi_reduction <add>, %1, %cst [1] : vector<16x128xf32> to vector<16xf32>
    %3 = vector.shape_cast %2 : vector<16xf32> to vector<16x1xf32>
    %4 = math.rsqrt %3 : vector<16x1xf32>
    %5 = vector.broadcast %4 : vector<16x1xf32> to vector<16x128xf32>
    %6 = arith.mulf %0, %5 : vector<16x128xf32>
    %c0_1 = arith.constant 0 : index
    %c0_2 = arith.constant 0 : index
    %7 = vector.load %arg2[%c0_1, %c0_2] : memref<16x128xf32, #tpu.memory_space<vmem>>, vector<16x128xf32>
    tpu.vector_store %arg2[%c0_1, %c0_2], %6 {strides = array<i32>} : memref<16x128xf32, #tpu.memory_space<vmem>>, vector<16x128xf32>,
    return
  }
  func.func @transform_0(%arg0: i32) -> (i32, i32) {
    %c0_i32 = arith.constant 0 : i32
    %c0_i32_0 = arith.constant 0 : i32
    return %arg0, %c0_i32 : i32, i32
  }
  func.func @transform_1(%arg0: i32) -> (i32, i32) {
    %c0_i32 = arith.constant 0 : i32
    %c0_i32_0 = arith.constant 0 : i32
    return %arg0, %c0_i32 : i32, i32
  }
}

</mosaic_0001>

<llo_original>
// kernel: tpu_custom_call.1
$region0: #{tpu_custom_call.1}
  #allocation0 [shape = 'u32[]', space=smem, size = 0x4, offset = 0x4, fixed_abs, tag = 'smem constant byte address 0x4 - core index']
  #allocation1 [shape = 'u32[72,128]{1,0:T(1,128)}', space=vmem, size = 0x9000, scoped, tag = 'internal scratch']
  %s0 = inlined_call_operand.hbm [shape: f32[16,128], index: 0, kind: input, shape index: {}]
  %s1 = inlined_call_operand.hbm [shape: f32[16,128], index: 1, kind: output, shape index: {}]
  %s2 = sld [smem:[#allocation0]]
  $region18: #{tpu_custom_call.1} parent=0
    _
  %s4 = ssub.s32 1, %s2
  %s5 = scalar_select 0, %s4, %s2
  $region1: #{tpu_custom_call.1} parent=0
    #allocation2 [shape = 'u8[8192]{0}', space=vmem, size = 0x2000, scoped, tag = 'input window, operand 0, single buffered']
    #allocation3 [shape = 's32[1]{0}', space=sflag, size = 0x4, scoped, tag = 'scoped memory for tpu_custom_call.1']
    #allocation4 [shape = 's32[1]{0}', space=sflag, size = 0x4, scoped, tag = 'scoped memory for tpu_custom_call.1']
    #allocation5 [shape = 'u8[8192]{0}', space=vmem, size = 0x2000, scoped, tag = 'output window, operand 0, single buffered']
    %6 = vsyncpa [#allocation3], 0
    %7 = vsyncpa [#allocation4], 0
    // Predicated region
    $region2: #{tpu_custom_call.1} parent=1 // pred_check
      _
    $region3: #{tpu_custom_call.1} parent=1 // pred_check_branch
      %9 = sbr.rel (0) target = $region5
    $region4: #{tpu_custom_call.1} parent=1 // pred_region
      %11 = vsyncadd [#allocation3], 0
      %s12 = sshll.u32 %s0, 4
      %s13 = int_to_ptr.hbm [resolvable:$true] %s12
      %s14 = sshll.u32 [#allocation2], 4
      %s15 = int_to_ptr.vmem [resolvable:$true] %s14
      %20 = dma.hbm_to_vmem [thread:$0]  %s13, 256, %s15, [#allocation3], 128, 128, 8
    $region5: #{tpu_custom_call.1} parent=1 // pred_fallthru
      _
    // Predicated region
    $region6: #{tpu_custom_call.1} parent=1 // pred_check
      _
    $region7: #{tpu_custom_call.1} parent=1 // pred_check_branch
      %22 = sbr.rel (0) target = $region9
    $region8: #{tpu_custom_call.1} parent=1 // pred_region
      %24 = dma.done [#allocation3], 256
    $region9: #{tpu_custom_call.1} parent=1 // pred_fallthru
      _
    %v25 = vld [vmem:[#allocation2] sm:$0xff]
    %v26 = vld [vmem:[#allocation2 + $0x8] sm:$0xff]
    %v27 = vmul.f32 %v25, %v25
    %v28 = vmul.f32 %v26, %v26
    %29 = vadd.xlane.f32.xlu0 %v27
    %v30 = vpop.xlane.xlu0 %29
    %31 = vadd.xlane.f32.xlu0 %v28
    %v32 = vpop.xlane.xlu0 %31
    %v33 = vrsqrt.pop %v30
    %v34 = vmul.f32 %v33, %v30
    %v35 = vmul.f32 %v34, %v33
    %v36 = vmul.f32 0.5, %v35
    %v37 = vsub.f32 1.5, %v36
    %v38 = vmul.f32 %v33, %v37
    %vm39 = vweird.f32 %v30
    %vm40 = vweird.f32 %v33
    %vm41 = vmor %vm39, %vm40
    %v42 = vsel %vm41, %v33, %v38
    %v43 = vrsqrt.pop %v32
    %v44 = vmul.f32 %v43, %v32
    %v45 = vmul.f32 %v44, %v43
    %v46 = vmul.f32 0.5, %v45
    %v47 = vsub.f32 1.5, %v46
    %v48 = vmul.f32 %v43, %v47
    %vm49 = vweird.f32 %v32
    %vm50 = vweird.f32 %v43
    %vm51 = vmor %vm49, %vm50
    %v52 = vsel %vm51, %v43, %v48
    %v53 = vmul.f32 %v25, %v42
    %v54 = vmul.f32 %v26, %v52
    %55 = vst [vmem:[#allocation5] sm:$0xff] %v53
    %56 = vst [vmem:[#allocation5 + $0x8] sm:$0xff] %v54
    // Predicated region
    $region10: #{tpu_custom_call.1} parent=1 // pred_check
      _
    $region11: #{tpu_custom_call.1} parent=1 // pred_check_branch
      %58 = sbr.rel (0) target = $region13
    $region12: #{tpu_custom_call.1} parent=1 // pred_region
      %60 = vsyncadd [#allocation4], 0
      %s61 = sshll.u32 [#allocation5], 4
      %s62 = int_to_ptr.vmem [resolvable:$true] %s61
      %s63 = sshll.u32 %s1, 4
      %s64 = int_to_ptr.hbm [resolvable:$true] %s63
      %69 = dma.vmem_to_hbm [thread:$0]  %s62, 256, %s64, [#allocation4], 128, 128, 8
    $region13: #{tpu_custom_call.1} parent=1 // pred_fallthru
      _
    // Predicated region
    $region14: #{tpu_custom_call.1} parent=1 // pred_check
      _
    $region15: #{tpu_custom_call.1} parent=1 // pred_check_branch
      %71 = sbr.rel (0) target = $region17
    $region16: #{tpu_custom_call.1} parent=1 // pred_region
      %73 = dma.done [#allocation4], 256
    $region17: #{tpu_custom_call.1} parent=1 // pred_fallthru
      _
    %74 = vsyncpa [#allocation3], 1
    %75 = vsyncpa [#allocation4], 1

</llo_original>
